<compile_context>
chip_gen: v7x
topology: tpu7x:2x2x1
jax: 0.10.0
libtpu: 0.0.40
codegen_flags: <defaults>
</compile_context>

<pallas_src>
import math
from functools import partial

import jax
import jax.numpy as jnp
from jax import lax
from jax.experimental import pallas as pl
from jax.experimental.pallas import tpu as pltpu


def _round_up(x, m):
    return ((x + m - 1) // m) * m


def encoder_kernel(x_ref, h_ref,
                   w_phi_ref, b_phi_ref,
                   w_x_ref, w_h_ref, b_enc_ref,
                   xenc_ref, musig_ref):
    """Fused phi_x (Linear+ReLU) + encoder_net (Linear) + chunk + exp."""
    wdt = w_phi_ref.dtype                       # MXU operand dtype (f32 / bf16)
    x = x_ref[...].astype(wdt)                  # (TB, input_dim)
    h = h_ref[...].astype(wdt)                  # (TB, D)

    # phi_x: Linear + ReLU.  f32 accumulation on the MXU; bias/ReLU on the VPU in f32.
    pre = (jnp.dot(x, w_phi_ref[...], preferred_element_type=jnp.float32)
           + b_phi_ref[...])                                      # (TB, D) f32
    x_enc_f32 = jnp.maximum(pre, 0.0)
    xenc_ref[...] = x_enc_f32.astype(xenc_ref.dtype)

    # encoder_net on cat([x_enc, h], -1), expressed with the weight pre-split into
    # its two (D, 2D) row blocks: one fused (TB, 2D) result [mu | log_sigma].
    # No concat, no lane-axis slicing, single output store.
    x_enc = x_enc_f32.astype(wdt)
    enc = (jnp.dot(x_enc, w_x_ref[...], preferred_element_type=jnp.float32)
           + jnp.dot(h, w_h_ref[...], preferred_element_type=jnp.float32)
           + b_enc_ref[...])                                      # (TB, 2D) f32

    # sigma = exp(log_sigma): exp only on the second half of the lanes via an
    # iota column mask (exp sits in the free EUP slot; select on the VPU).
    d2 = enc.shape[-1]
    col = lax.broadcasted_iota(jnp.int32, enc.shape, 1)
    out = jnp.where(col < (d2 // 2), enc, jnp.exp(enc))
    musig_ref[...] = out.astype(musig_ref.dtype)


def encoder_pallas(x, h0, params, *, tb_cap=1024):
    """x: (B, input_dim); h0: (B, D); params: pre-laid-out weights.

    Returns (x_enc (B, D), mu_sigma (B, 2D)) with mu_sigma = [mu | sigma].
    """
    B, input_dim = x.shape
    D = h0.shape[-1]
    dtype = x.dtype

    # Batch tile: as large as possible (fewer, fatter grid steps), capped at
    # tb_cap rows; when the batch is big enough force >= 2 grid steps so
    # dimension_semantics=("parallel",) can shard across v7x's 2 TensorCores.
    B8 = _round_up(max(B, 1), 8)
    TB = min(tb_cap, B8)
    if B8 >= 16:
        TB = min(TB, _round_up(pl.cdiv(B8, 2), 8))
    TB = max(TB, 8)
    nb = pl.cdiv(B, TB)          # partial last block handled by Pallas masking

    const = lambda i: (0, 0)     # weights / biases stay VMEM-resident
    row = lambda i: (i, 0)       # batch-tiled activations / outputs

    w_elems = (params["w_phi_t"].size + params["w_x"].size + params["w_h"].size
               + params["b_phi"].size + params["b_enc"].size)
    cost = pl.CostEstimate(
        flops=2 * B * D * (input_dim + 4 * D),
        transcendentals=B * D,
        bytes_accessed=(B * (input_dim + 4 * D) + w_elems) * x.dtype.itemsize,
    )

    x_enc, mu_sigma = pl.pallas_call(
        encoder_kernel,
        out_shape=(
            jax.ShapeDtypeStruct((B, D), dtype),        # x_enc
            jax.ShapeDtypeStruct((B, 2 * D), dtype),    # [mu | sigma]
        ),
        grid=(nb,),
        in_specs=[
            pl.BlockSpec((TB, input_dim), row),         # x
            pl.BlockSpec((TB, D), row),                 # h0
            pl.BlockSpec((input_dim, D), const),        # W_phi^T
            pl.BlockSpec((1, D), const),                # b_phi
            pl.BlockSpec((D, 2 * D), const),            # W_enc^T rows for x_enc
            pl.BlockSpec((D, 2 * D), const),            # W_enc^T rows for h
            pl.BlockSpec((1, 2 * D), const),            # b_enc
        ],
        out_specs=(
            pl.BlockSpec((TB, D), row),
            pl.BlockSpec((TB, 2 * D), row),
        ),
        compiler_params=pltpu.CompilerParams(
            dimension_semantics=("parallel",),          # megacore-shard batch on v7x
            vmem_limit_bytes=32 * 1024 * 1024,          # safe on 64 MiB v7x VMEM
        ),
        cost_estimate=cost,
    )(x, h0,
      params["w_phi_t"], params["b_phi"],
      params["w_x"], params["w_h"], params["b_enc"])

    return x_enc, mu_sigma


@jax.jit
def _encoder_forward(x, h0, params):
    D = h0.shape[-1]
    x_enc, mu_sigma = encoder_pallas(x, h0, params)
    mu = lax.slice_in_dim(mu_sigma, 0, D, axis=-1)
    sigma = lax.slice_in_dim(mu_sigma, D, 2 * D, axis=-1)
    return x_enc, mu, sigma


class ReparameterizedDiagonalGaussian:
    """JAX mirror of the PyTorch distribution (mu, sigma computed in-kernel)."""

    def __init__(self, mu, sigma):
        assert mu.shape == sigma.shape
        self.mu = mu
        self.sigma = sigma

    def sample_epsilon(self, key):
        return jax.random.normal(key, self.mu.shape, dtype=self.mu.dtype)

    def rsample(self, key):
        return self.mu + self.sigma * self.sample_epsilon(key)

    def log_prob(self, z):
        var = self.sigma ** 2
        lp = (-((z - self.mu) ** 2) / (2.0 * var)
              - jnp.log(self.sigma) - 0.5 * jnp.log(2.0 * jnp.pi))
        return jnp.sum(lp, axis=-1)

    @property
    def mean(self):
        return self.mu

    @property
    def variance(self):
        return self.sigma ** 2


class Encoder:
    """Mirrors torch Encoder: phi_x = Linear+ReLU; encoder_net = Linear(2D, 2D)."""

    def __init__(self, input_dim, latent_dim, key, mxu_dtype=jnp.float32):
        # mxu_dtype=jnp.bfloat16 recommended on v6e/v7x (native MXU dtype, half
        # the weight DMA); default f32 keeps the PyTorch f32 numerics exactly.
        D = latent_dim
        k1, k2, k3, k4 = jax.random.split(key, 4)

        # PyTorch default Linear init (kept in PyTorch (out, in) layout here).
        bp = 1.0 / math.sqrt(input_dim)
        w_phi = jax.random.uniform(k1, (D, input_dim), jnp.float32, -bp, bp)
        b_phi = jax.random.uniform(k2, (D,), jnp.float32, -bp, bp)

        be = 1.0 / math.sqrt(2 * D)
        w_enc = jax.random.uniform(k3, (2 * D, 2 * D), jnp.float32, -be, be)
        b_enc = jax.random.uniform(k4, (2 * D,), jnp.float32, -be, be)

        # Keep originals for the reference check.
        self.w_phi, self.b_phi_raw = w_phi, b_phi
        self.w_enc, self.b_enc = w_enc, b_enc

        # --- one-time layout plumbing (hoisted out of the forward path) ---
        w_phi_t = jnp.transpose(w_phi).astype(mxu_dtype)   # (input_dim, D)
        w_enc_t = jnp.transpose(w_enc).astype(mxu_dtype)   # (2D_in, 2D_out)
        self.params = {
            "w_phi_t": w_phi_t,
            "b_phi": b_phi.reshape(1, D).astype(jnp.float32),
            "w_x": w_enc_t[:D, :],          # x_enc rows -> [mu | log_sigma] cols
            "w_h": w_enc_t[D:, :],          # h     rows -> [mu | log_sigma] cols
            "b_enc": b_enc.reshape(1, 2 * D).astype(jnp.float32),
        }

    def __call__(self, x, h):
        # TODO(synk): for per-timestep VRNN usage, stack timesteps into the batch
        # axis so one pallas_call covers the whole sequence.
        x_enc, mu, sigma = _encoder_forward(x, h[0], self.params)
        return ReparameterizedDiagonalGaussian(mu, sigma), x_enc


def _reference(enc, x, h0):
    x_enc_ref = jnp.maximum(x @ enc.w_phi.T + enc.b_phi_raw, 0.0)
    e = jnp.concatenate([x_enc_ref, h0], axis=-1) @ enc.w_enc.T + enc.b_enc
    mu_ref, ls_ref = jnp.split(e, 2, axis=-1)
    return x_enc_ref, mu_ref, jnp.exp(ls_ref)


if __name__ == "__main__":
    key = jax.random.PRNGKey(0)
    k_param, k_x, k_h, k_eps, k_x2, k_h2 = jax.random.split(key, 6)

    input_dim = 16
    latent_dim = 32
    batch = 8

    enc = Encoder(input_dim, latent_dim, k_param)

    x = jax.random.normal(k_x, (batch, input_dim), dtype=jnp.float32)
    h0 = jax.random.normal(k_h, (batch, latent_dim), dtype=jnp.float32)
    h = (h0,)

    dist, x_enc = enc(x, h)
    x_enc = jax.block_until_ready(x_enc)
    mu = jax.block_until_ready(dist.mean)
    sigma = jax.block_until_ready(jnp.sqrt(dist.variance))

    x_enc_ref, mu_ref, sigma_ref = _reference(enc, x, h0)
    assert jnp.allclose(x_enc, x_enc_ref, atol=1e-5)
    assert jnp.allclose(mu, mu_ref, atol=1e-5)
    assert jnp.allclose(sigma, sigma_ref, atol=1e-5)

    # Second check: batch not a multiple of the tile (exercises partial-block
    # masking, i.e. the no-pad / no-slice path) and a >= 2-step grid (megacore).
    batch2 = 40
    x2 = jax.random.normal(k_x2, (batch2, input_dim), dtype=jnp.float32)
    h02 = jax.random.normal(k_h2, (batch2, latent_dim), dtype=jnp.float32)
    dist2, x_enc2 = enc(x2, (h02,))
    x_enc2 = jax.block_until_ready(x_enc2)
    xr2, mr2, sr2 = _reference(enc, x2, h02)
    assert jnp.allclose(x_enc2, xr2, atol=1e-5)
    assert jnp.allclose(dist2.mean, mr2, atol=1e-5)
    assert jnp.allclose(jnp.sqrt(dist2.variance), sr2, atol=1e-5)

    # Exercise rsample / log_prob paths (plain-JAX glue on kernel outputs).
    z = jax.block_until_ready(dist.rsample(k_eps))
    lp = jax.block_until_ready(dist.log_prob(z))
    assert z.shape == (batch, latent_dim)
    assert lp.shape == (batch,)

    print("KERNEL_OK")
</pallas_src>

<mosaic_0001>
module attributes {stable_mosaic.version = 11 : i64} {
  func.func @encoder_kernel(%arg0: i32, %arg1: memref<8x16xf32, #tpu.memory_space<vmem>>, %arg2: memref<8x32xf32, #tpu.memory_space<vmem>>, %arg3: memref<16x32xf32, #tpu.memory_space<vmem>>, %arg4: memref<1x32xf32, #tpu.memory_space<vmem>>, %arg5: memref<32x64xf32, #tpu.memory_space<vmem>>, %arg6: memref<32x64xf32, #tpu.memory_space<vmem>>, %arg7: memref<1x64xf32, #tpu.memory_space<vmem>>, %arg8: memref<8x32xf32, #tpu.memory_space<vmem>>, %arg9: memref<8x64xf32, #tpu.memory_space<vmem>>) attributes {dimension_semantics = [#tpu.dimension_semantics<parallel>], iteration_bounds = array<i64: 1>, scalar_prefetch = 0 : i64, scratch_operands = 0 : i64, tpu.core_type = #tpu.core_type<tc>, window_params = [{transform_indices = @transform_0, window_bounds = array<i64: 8, 16>}, {transform_indices = @transform_1, window_bounds = array<i64: 8, 32>}, {pipeline_mode = #tpu.pipeline_mode<synchronous>, transform_indices = @transform_2, window_bounds = array<i64: 16, 32>}, {pipeline_mode = #tpu.pipeline_mode<synchronous>, transform_indices = @transform_3, window_bounds = array<i64: 1, 32>}, {pipeline_mode = #tpu.pipeline_mode<synchronous>, transform_indices = @transform_4, window_bounds = array<i64: 32, 64>}, {pipeline_mode = #tpu.pipeline_mode<synchronous>, transform_indices = @transform_5, window_bounds = array<i64: 32, 64>}, {pipeline_mode = #tpu.pipeline_mode<synchronous>, transform_indices = @transform_6, window_bounds = array<i64: 1, 64>}, {transform_indices = @transform_7, window_bounds = array<i64: 8, 32>}, {transform_indices = @transform_8, window_bounds = array<i64: 8, 64>}]} {
    %c0 = arith.constant 0 : index
    %c0_0 = arith.constant 0 : index
    %0 = vector.load %arg1[%c0, %c0_0] : memref<8x16xf32, #tpu.memory_space<vmem>>, vector<8x16xf32>
    %c0_1 = arith.constant 0 : index
    %c0_2 = arith.constant 0 : index
    %1 = vector.load %arg2[%c0_1, %c0_2] : memref<8x32xf32, #tpu.memory_space<vmem>>, vector<8x32xf32>
    %c0_3 = arith.constant 0 : index
    %c0_4 = arith.constant 0 : index
    %2 = vector.load %arg3[%c0_3, %c0_4] : memref<16x32xf32, #tpu.memory_space<vmem>>, vector<16x32xf32>
    %cst = arith.constant dense<0.000000e+00> : vector<8x32xf32>
    %3 = tpu.matmul %0, %2, %cst {dimension_numbers = #tpu.dot_dimension_numbers<[1], [0], [0], [1], [0, 0, 1, 1], [], []>} : vector<8x16xf32>, vector<16x32xf32>, vector<8x32xf32> -> vector<8x32xf32>
    %c0_5 = arith.constant 0 : index
    %c0_6 = arith.constant 0 : index
    %4 = vector.load %arg4[%c0_5, %c0_6] : memref<1x32xf32, #tpu.memory_space<vmem>>, vector<1x32xf32>
    %5 = vector.broadcast %4 : vector<1x32xf32> to vector<8x32xf32>
    %6 = arith.addf %3, %5 : vector<8x32xf32>
    %cst_7 = arith.constant 0.000000e+00 : f32
    %7 = vector.broadcast %cst_7 : f32 to vector<8x32xf32>
    %8 = arith.maximumf %6, %7 : vector<8x32xf32>
    %c0_8 = arith.constant 0 : index
    %c0_9 = arith.constant 0 : index
    %9 = vector.load %arg8[%c0_8, %c0_9] : memref<8x32xf32, #tpu.memory_space<vmem>>, vector<8x32xf32>
    tpu.vector_store %arg8[%c0_8, %c0_9], %8 {strides = array<i32>} : memref<8x32xf32, #tpu.memory_space<vmem>>, vector<8x32xf32>,
    %c0_10 = arith.constant 0 : index
    %c0_11 = arith.constant 0 : index
    %10 = vector.load %arg5[%c0_10, %c0_11] : memref<32x64xf32, #tpu.memory_space<vmem>>, vector<32x64xf32>
    %cst_12 = arith.constant dense<0.000000e+00> : vector<8x64xf32>
    %11 = tpu.matmul %8, %10, %cst_12 {dimension_numbers = #tpu.dot_dimension_numbers<[1], [0], [0], [1], [0, 0, 1, 1], [], []>} : vector<8x32xf32>, vector<32x64xf32>, vector<8x64xf32> -> vector<8x64xf32>
    %c0_13 = arith.constant 0 : index
    %c0_14 = arith.constant 0 : index
    %12 = vector.load %arg6[%c0_13, %c0_14] : memref<32x64xf32, #tpu.memory_space<vmem>>, vector<32x64xf32>
    %cst_15 = arith.constant dense<0.000000e+00> : vector<8x64xf32>
    %13 = tpu.matmul %1, %12, %cst_15 {dimension_numbers = #tpu.dot_dimension_numbers<[1], [0], [0], [1], [0, 0, 1, 1], [], []>} : vector<8x32xf32>, vector<32x64xf32>, vector<8x64xf32> -> vector<8x64xf32>
    %14 = arith.addf %11, %13 : vector<8x64xf32>
    %c0_16 = arith.constant 0 : index
    %c0_17 = arith.constant 0 : index
    %15 = vector.load %arg7[%c0_16, %c0_17] : memref<1x64xf32, #tpu.memory_space<vmem>>, vector<1x64xf32>
    %16 = vector.broadcast %15 : vector<1x64xf32> to vector<8x64xf32>
    %17 = arith.addf %14, %16 : vector<8x64xf32>
    %18 = tpu.iota {dimensions = array<i32: 1>} : vector<8x64xi32>
    %c32_i32 = arith.constant 32 : i32
    %19 = vector.broadcast %c32_i32 : i32 to vector<8x64xi32>
    %20 = arith.cmpi slt, %18, %19 : vector<8x64xi32>
    %21 = math.exp %17 : vector<8x64xf32>
    %22 = arith.select %20, %17, %21 : vector<8x64xi1>, vector<8x64xf32>
    %c0_18 = arith.constant 0 : index
    %c0_19 = arith.constant 0 : index
    %23 = vector.load %arg9[%c0_18, %c0_19] : memref<8x64xf32, #tpu.memory_space<vmem>>, vector<8x64xf32>
    tpu.vector_store %arg9[%c0_18, %c0_19], %22 {strides = array<i32>} : memref<8x64xf32, #tpu.memory_space<vmem>>, vector<8x64xf32>,
    return
  }
  func.func @transform_0(%arg0: i32) -> (i32, i32) {
    %c0_i32 = arith.constant 0 : i32
    %c0_i32_0 = arith.constant 0 : i32
    return %arg0, %c0_i32 : i32, i32
  }
  func.func @transform_1(%arg0: i32) -> (i32, i32) {
    %c0_i32 = arith.constant 0 : i32
    %c0_i32_0 = arith.constant 0 : i32
    return %arg0, %c0_i32 : i32, i32
  }
  func.func @transform_2(%arg0: i32) -> (i32, i32) {
    %c0_i32 = arith.constant 0 : i32
    %c0_i32_0 = arith.constant 0 : i32
    %c0_i32_1 = arith.constant 0 : i32
    return %c0_i32, %c0_i32_0 : i32, i32
  }
  func.func @transform_3(%arg0: i32) -> (i32, i32) {
    %c0_i32 = arith.constant 0 : i32
    %c0_i32_0 = arith.constant 0 : i32
    %c0_i32_1 = arith.constant 0 : i32
    return %c0_i32, %c0_i32_0 : i32, i32
  }
  func.func @transform_4(%arg0: i32) -> (i32, i32) {
    %c0_i32 = arith.constant 0 : i32
    %c0_i32_0 = arith.constant 0 : i32
    %c0_i32_1 = arith.constant 0 : i32
    return %c0_i32, %c0_i32_0 : i32, i32
  }
  func.func @transform_5(%arg0: i32) -> (i32, i32) {
    %c0_i32 = arith.constant 0 : i32
    %c0_i32_0 = arith.constant 0 : i32
    %c0_i32_1 = arith.constant 0 : i32
    return %c0_i32, %c0_i32_0 : i32, i32
  }
  func.func @transform_6(%arg0: i32) -> (i32, i32) {
    %c0_i32 = arith.constant 0 : i32
    %c0_i32_0 = arith.constant 0 : i32
    %c0_i32_1 = arith.constant 0 : i32
    return %c0_i32, %c0_i32_0 : i32, i32
  }
  func.func @transform_7(%arg0: i32) -> (i32, i32) {
    %c0_i32 = arith.constant 0 : i32
    %c0_i32_0 = arith.constant 0 : i32
    return %arg0, %c0_i32 : i32, i32
  }
  func.func @transform_8(%arg0: i32) -> (i32, i32) {
    %c0_i32 = arith.constant 0 : i32
    %c0_i32_0 = arith.constant 0 : i32
    return %arg0, %c0_i32 : i32, i32
  }
}

</mosaic_0001>

<llo_original>
// kernel: _encoder_forward.1
$region0: #{_encoder_forward.1}
  #allocation0 [shape = 'u32[]', space=smem, size = 0x4, offset = 0x4, fixed_abs, tag = 'smem constant byte address 0x4 - core index']
  #allocation1 [shape = 'u32[144,128]{1,0:T(1,128)}', space=vmem, size = 0x12000, scoped, tag = 'internal scratch']
  %s0 = inlined_call_operand.hbm [shape: f32[8,16], index: 0, kind: input, shape index: {}]
  %s1 = inlined_call_operand.hbm [shape: f32[8,32], index: 1, kind: input, shape index: {}]
  %s2 = inlined_call_operand.vmem [shape: f32[16,32], index: 2, kind: input, shape index: {}]
  %s3 = inlined_call_operand.vmem [shape: f32[1,32], index: 3, kind: input, shape index: {}]
  %s4 = inlined_call_operand.hbm [shape: f32[32,64], index: 4, kind: input, shape index: {}]
  %s5 = inlined_call_operand.hbm [shape: f32[32,64], index: 5, kind: input, shape index: {}]
  %s6 = inlined_call_operand.vmem [shape: f32[1,64], index: 6, kind: input, shape index: {}]
  %s7 = inlined_call_operand.hbm [shape: f32[8,32], index: 7, kind: output, shape index: {0}]
  %s8 = inlined_call_operand.vmem [shape: f32[8,64], index: 8, kind: output, shape index: {1}]
  %9 = xla_tuple %s7, %s8
  %s10 = sld [smem:[#allocation0]]
  $region62: #{_encoder_forward.1} parent=0
    _
  %s12 = ssub.s32 1, %s10
  %s13 = scalar_select 0, %s12, %s10
  $region1: #{_encoder_forward.1} parent=0
    #allocation2 [shape = 'u8[4096]{0}', space=vmem, size = 0x1000, scoped, tag = 'input window, operand 0, single buffered']
    #allocation3 [shape = 's32[1]{0}', space=sflag, size = 0x4, scoped, tag = 'scoped memory for _encoder_forward.1']
    #allocation4 [shape = 's32[1]{0}', space=sflag, size = 0x4, scoped, tag = 'scoped memory for _encoder_forward.1']
    #allocation5 [shape = 'u8[4096]{0}', space=vmem, size = 0x1000, scoped, tag = 'input window, operand 1, single buffered']
    #allocation6 [shape = 's32[1]{0}', space=sflag, size = 0x4, scoped, tag = 'scoped memory for _encoder_forward.1']
    #allocation7 [shape = 'u8[16384]{0}', space=vmem, size = 0x4000, scoped, tag = 'input window, operand 4, single buffered']
    #allocation8 [shape = 'u8[16384]{0}', space=vmem, size = 0x4000, scoped, tag = 'input window, operand 5, single buffered']
    #allocation9 [shape = 's32[1]{0}', space=sflag, size = 0x4, scoped, tag = 'scoped memory for _encoder_forward.1']
    #allocation10 [shape = 'u8[4096]{0}', space=vmem, size = 0x1000, scoped, tag = 'output window, operand 0, single buffered']
    %14 = vsyncpa [#allocation3], 0
    %15 = vsyncpa [#allocation6], 0
    %16 = vsyncpa [#allocation9], 0
    %17 = vsyncpa [#allocation4], 0
    // Predicated region
    $region2: #{_encoder_forward.1} parent=1 // pred_check
      _
    $region3: #{_encoder_forward.1} parent=1 // pred_check_branch
      %19 = sbr.rel (0) target = $region5
    $region4: #{_encoder_forward.1} parent=1 // pred_region
      %s21 = ssub.s32 128, 128
      %22 = vsyncadd [#allocation3], %s21
      %s24 = sshll.u32 [#allocation2], 4
      %s25 = int_to_ptr.vmem [resolvable:$true] %s24
      %27 = dma.hbm_to_vmem [thread:$0]  %s0, 128, %s25, [#allocation3]
    $region5: #{_encoder_forward.1} parent=1 // pred_fallthru
      _
    // Predicated region
    $region6: #{_encoder_forward.1} parent=1 // pred_check
      _
    $region7: #{_encoder_forward.1} parent=1 // pred_check_branch
      %29 = sbr.rel (0) target = $region9
    $region8: #{_encoder_forward.1} parent=1 // pred_region
      %s31 = ssub.s32 128, 128
      %32 = vsyncadd [#allocation6], %s31
      %s34 = sshll.u32 [#allocation5], 4
      %s35 = int_to_ptr.vmem [resolvable:$true] %s34
      %37 = dma.hbm_to_vmem [thread:$0]  %s1, 128, %s35, [#allocation6]
    $region9: #{_encoder_forward.1} parent=1 // pred_fallthru
      _
    // Predicated region
    $region10: #{_encoder_forward.1} parent=1 // pred_check
      _
    $region11: #{_encoder_forward.1} parent=1 // pred_check_branch
      %39 = sbr.rel (0) target = $region13
    $region12: #{_encoder_forward.1} parent=1 // pred_region
      _
    $region13: #{_encoder_forward.1} parent=1 // pred_fallthru
      _
    // Predicated region
    $region14: #{_encoder_forward.1} parent=1 // pred_check
      _
    $region15: #{_encoder_forward.1} parent=1 // pred_check_branch
      %41 = sbr.rel (0) target = $region17
    $region16: #{_encoder_forward.1} parent=1 // pred_region
      _
    $region17: #{_encoder_forward.1} parent=1 // pred_fallthru
      _
    // Predicated region
    $region18: #{_encoder_forward.1} parent=1 // pred_check
      _
    $region19: #{_encoder_forward.1} parent=1 // pred_check_branch
      %43 = sbr.rel (0) target = $region21
    $region20: #{_encoder_forward.1} parent=1 // pred_region
      %s45 = ssub.s32 512, 512
      %46 = vsyncadd [#allocation6], %s45
      %s47 = sshll.u32 [#allocation7], 4
      %s48 = int_to_ptr.vmem [resolvable:$true] %s47
      %53 = dma.hbm_to_vmem [thread:$0]  %s4, 512, %s48, [#allocation6], 128, 128, 8
    $region21: #{_encoder_forward.1} parent=1 // pred_fallthru
      _
    // Predicated region
    $region22: #{_encoder_forward.1} parent=1 // pred_check
      _
    $region23: #{_encoder_forward.1} parent=1 // pred_check_branch
      %55 = sbr.rel (0) target = $region25
    $region24: #{_encoder_forward.1} parent=1 // pred_region
      %s57 = ssub.s32 512, 512
      %58 = vsyncadd [#allocation9], %s57
      %s59 = sshll.u32 [#allocation8], 4
      %s60 = int_to_ptr.vmem [resolvable:$true] %s59
      %65 = dma.hbm_to_vmem [thread:$0]  %s5, 512, %s60, [#allocation9], 128, 128, 8
    $region25: #{_encoder_forward.1} parent=1 // pred_fallthru
      _
    // Predicated region
    $region26: #{_encoder_forward.1} parent=1 // pred_check
      _
    $region27: #{_encoder_forward.1} parent=1 // pred_check_branch
      %67 = sbr.rel (0) target = $region29
    $region28: #{_encoder_forward.1} parent=1 // pred_region
      _
    $region29: #{_encoder_forward.1} parent=1 // pred_fallthru
      _
    // Predicated region
    $region30: #{_encoder_forward.1} parent=1 // pred_check
      _
    $region31: #{_encoder_forward.1} parent=1 // pred_check_branch
      %69 = sbr.rel (0) target = $region33
    $region32: #{_encoder_forward.1} parent=1 // pred_region
      %70 = dma.done [#allocation3], 128
    $region33: #{_encoder_forward.1} parent=1 // pred_fallthru
      _
    // Predicated region
    $region34: #{_encoder_forward.1} parent=1 // pred_check
      _
    $region35: #{_encoder_forward.1} parent=1 // pred_check_branch
      %72 = sbr.rel (0) target = $region37
    $region36: #{_encoder_forward.1} parent=1 // pred_region
      %73 = dma.done [#allocation6], 128
    $region37: #{_encoder_forward.1} parent=1 // pred_fallthru
      _
    // Predicated region
    $region38: #{_encoder_forward.1} parent=1 // pred_check
      _
    $region39: #{_encoder_forward.1} parent=1 // pred_check_branch
      %75 = sbr.rel (0) target = $region41
    $region40: #{_encoder_forward.1} parent=1 // pred_region
      %76 = dma.done [#allocation6], 512
    $region41: #{_encoder_forward.1} parent=1 // pred_fallthru
      _
    // Predicated region
    $region42: #{_encoder_forward.1} parent=1 // pred_check
      _
    $region43: #{_encoder_forward.1} parent=1 // pred_check_branch
      %78 = sbr.rel (0) target = $region45
    $region44: #{_encoder_forward.1} parent=1 // pred_region
      %79 = dma.done [#allocation9], 512
    $region45: #{_encoder_forward.1} parent=1 // pred_fallthru
      _
    %v80 = vld [vmem:[#allocation2] sm:$0xff]
    %v81 = vld [vmem:[#allocation5] sm:$0xff]
    %v82 = vld [vmem:[%s2] sm:$0xff]
    %v83 = vld [vmem:[%s2 + $0x8] sm:$0xff]
    %v84 = vld [vmem:[%s3] sm:$0x1]
    %v86 = vlaneseq
    %v87 = vshrl.u32 %v86, 7
    %v88 = vsub.s32 0, %v87
    %v89 = vrot.slane %v84, %v88
    %vm91 = vcmask 130048
    %v93 = vsel %vm91, %v80, 0
    %95 = vmatprep.subr.mxu0 0.0
    %96 = vmatpush1.msra.mxu0 %v82
    %97 = vmatprep.subr.mxu0 0.0
    %98 = vmatpush1.msra.mxu0 %v83
    %99 = vmatprep.subr.mxu0 0.0
    %100 = vmatpush1.msra.mxu0 0.0
    %101 = vmatprep.subr.mxu0 0.0
    %102 = vmatpush1.msra.mxu0 0.0
    %103 = vmatprep.subr.mxu0 0.0
    %104 = vmatpush1.msra.mxu0 0.0
    %105 = vmatprep.subr.mxu0 0.0
    %106 = vmatpush1.msra.mxu0 0.0
    %107 = vmatprep.subr.mxu0 0.0
    %108 = vmatpush1.msra.mxu0 0.0
    %109 = vmatprep.subr.mxu0 0.0
    %110 = vmatpush1.msra.mxu0 0.0
    %111 = vmatprep.subr.mxu0 0.0
    %112 = vmatpush1.msra.mxu0 0.0
    %113 = vmatprep.subr.mxu0 0.0
    %114 = vmatpush1.msra.mxu0 0.0
    %115 = vmatprep.subr.mxu0 0.0
    %116 = vmatpush1.msra.mxu0 0.0
    %117 = vmatprep.subr.mxu0 0.0
    %118 = vmatpush1.msra.mxu0 0.0
    %119 = vmatprep.subr.mxu0 0.0
    %120 = vmatpush1.msra.mxu0 0.0
    %121 = vmatprep.subr.mxu0 0.0
    %122 = vmatpush1.msra.mxu0 0.0
    %123 = vmatprep.subr.mxu0 0.0
    %124 = vmatpush1.msra.mxu0 0.0
    %125 = vmatprep.subr.mxu0 0.0
    %126 = vmatpush1.msra.mxu0 0.0
    %127 = vmatprep.subr.mxu0 0.0
    %128 = vmatpush1.msra.mxu0 0.0
    %129 = vmatprep.subr.mxu0 0.0
    %130 = vmatpush1.msra.mxu0 0.0
    %131 = vmatprep.subr.mxu0 0.0
    %132 = vmatpush1.msra.mxu0 0.0
    %133 = vmatprep.subr.mxu0 0.0
    %134 = vmatpush1.msra.mxu0 0.0
    %135 = vmatprep.subr.mxu0 0.0
    %136 = vmatpush1.msra.mxu0 0.0
    %137 = vmatprep.subr.mxu0 0.0
    %138 = vmatpush1.msra.mxu0 0.0
    %139 = vmatprep.subr.mxu0 0.0
    %140 = vmatpush1.msra.mxu0 0.0
    %141 = vmatprep.subr.mxu0 0.0
    %142 = vmatpush1.msra.mxu0 0.0
    %143 = vmatprep.subr.mxu0 0.0
    %144 = vmatpush1.msra.mxu0 0.0
    %145 = vmatprep.subr.mxu0 0.0
    %146 = vmatpush1.msra.mxu0 0.0
    %147 = vmatprep.subr.mxu0 0.0
    %148 = vmatpush1.msra.mxu0 0.0
    %149 = vmatprep.subr.mxu0 0.0
    %150 = vmatpush1.msra.mxu0 0.0
    %151 = vmatprep.subr.mxu0 0.0
    %152 = vmatpush1.msra.mxu0 0.0
    %153 = vmatprep.subr.mxu0 0.0
    %154 = vmatpush1.msra.mxu0 0.0
    %155 = vmatprep.subr.mxu0 0.0
    %156 = vmatpush1.msra.mxu0 0.0
    %157 = vmatprep.subr.mxu0 0.0
    %158 = vmatpush1.msra.mxu0 0.0
    %159 = vmatprep.mubr.f32.mxu0 0.0
    %160 = vmatmul.mubr.f32.gmra.mrb[0].mxu0 %v93
    %v161 = vpop.f32.mrb[0].mxu0
    %v162 = vadd.f32 %v89, %v161
    %v163 = vpop.f32.mrb[0].mxu0
    %164 = vdwg.mxu0
    %v165 = vmax.f32 %v162, 0.0
    %vm166 = vcmask 261120
    %167 = vst.msk [vmem:[#allocation10] sm:$0xff] %vm166, %v165
    %v168 = vld [vmem:[#allocation7] sm:$0xff]
    %v169 = vld [vmem:[#allocation7 + $0x8] sm:$0xff]
    %v170 = vld [vmem:[#allocation7 + $0x10] sm:$0xff]
    %v171 = vld [vmem:[#allocation7 + $0x18] sm:$0xff]
    %v172 = vld [vmem:[#allocation8] sm:$0xff]
    %v173 = vld [vmem:[#allocation8 + $0x8] sm:$0xff]
    %v174 = vld [vmem:[#allocation8 + $0x10] sm:$0xff]
    %v175 = vld [vmem:[#allocation8 + $0x18] sm:$0xff]
    %v177 = vsel %vm166, %v81, 0
    %179 = vmatprep.subr.mxu0 0.0
    %180 = vmatpush1.msra.mxu0 %v172
    %181 = vmatprep.subr.mxu0 0.0
    %182 = vmatpush1.msra.mxu0 %v173
    %183 = vmatprep.subr.mxu0 0.0
    %184 = vmatpush1.msra.mxu0 %v174
    %185 = vmatprep.subr.mxu0 0.0
    %186 = vmatpush1.msra.mxu0 %v175
    %187 = vmatprep.subr.mxu0 0.0
    %188 = vmatpush1.msra.mxu0 0.0
    %189 = vmatprep.subr.mxu0 0.0
    %190 = vmatpush1.msra.mxu0 0.0
    %191 = vmatprep.subr.mxu0 0.0
    %192 = vmatpush1.msra.mxu0 0.0
    %193 = vmatprep.subr.mxu0 0.0
    %194 = vmatpush1.msra.mxu0 0.0
    %195 = vmatprep.subr.mxu0 0.0
    %196 = vmatpush1.msra.mxu0 0.0
    %197 = vmatprep.subr.mxu0 0.0
    %198 = vmatpush1.msra.mxu0 0.0
    %199 = vmatprep.subr.mxu0 0.0
    %200 = vmatpush1.msra.mxu0 0.0
    %201 = vmatprep.subr.mxu0 0.0
    %202 = vmatpush1.msra.mxu0 0.0
    %203 = vmatprep.subr.mxu0 0.0
    %204 = vmatpush1.msra.mxu0 0.0
    %205 = vmatprep.subr.mxu0 0.0
    %206 = vmatpush1.msra.mxu0 0.0
    %207 = vmatprep.subr.mxu0 0.0
    %208 = vmatpush1.msra.mxu0 0.0
    %209 = vmatprep.subr.mxu0 0.0
    %210 = vmatpush1.msra.mxu0 0.0
    %211 = vmatprep.subr.mxu0 0.0
    %212 = vmatpush1.msra.mxu0 0.0
    %213 = vmatprep.subr.mxu0 0.0
    %214 = vmatpush1.msra.mxu0 0.0
    %215 = vmatprep.subr.mxu0 0.0
    %216 = vmatpush1.msra.mxu0 0.0
    %217 = vmatprep.subr.mxu0 0.0
    %218 = vmatpush1.msra.mxu0 0.0
    %219 = vmatprep.subr.mxu0 0.0
    %220 = vmatpush1.msra.mxu0 0.0
    %221 = vmatprep.subr.mxu0 0.0
    %222 = vmatpush1.msra.mxu0 0.0
    %223 = vmatprep.subr.mxu0 0.0
    %224 = vmatpush1.msra.mxu0 0.0
    %225 = vmatprep.subr.mxu0 0.0
    %226 = vmatpush1.msra.mxu0 0.0
    %227 = vmatprep.subr.mxu0 0.0
    %228 = vmatpush1.msra.mxu0 0.0
    %229 = vmatprep.subr.mxu0 0.0
    %230 = vmatpush1.msra.mxu0 0.0
    %231 = vmatprep.subr.mxu0 0.0
    %232 = vmatpush1.msra.mxu0 0.0
    %233 = vmatprep.subr.mxu0 0.0
    %234 = vmatpush1.msra.mxu0 0.0
    %235 = vmatprep.subr.mxu0 0.0
    %236 = vmatpush1.msra.mxu0 0.0
    %237 = vmatprep.subr.mxu0 0.0
    %238 = vmatpush1.msra.mxu0 0.0
    %239 = vmatprep.subr.mxu0 0.0
    %240 = vmatpush1.msra.mxu0 0.0
    %241 = vmatprep.subr.mxu0 0.0
    %242 = vmatpush1.msra.mxu0 0.0
    %243 = vmatprep.mubr.f32.mxu0 0.0
    %244 = vmatmul.mubr.f32.gmra.mrb[0].mxu0 %v177
    %v245 = vpop.f32.mrb[0].mxu0
    %v246 = vadd.f32 0.0, %v245
    %v247 = vpop.f32.mrb[0].mxu0
    %248 = vdwg.mxu0
    %v250 = vsel %vm166, %v165, 0
    %252 = vmatprep.subr.mxu0 0.0
    %253 = vmatpush1.msra.mxu0 %v168
    %254 = vmatprep.subr.mxu0 0.0
    %255 = vmatpush1.msra.mxu0 %v169
    %256 = vmatprep.subr.mxu0 0.0
    %257 = vmatpush1.msra.mxu0 %v170
    %258 = vmatprep.subr.mxu0 0.0
    %259 = vmatpush1.msra.mxu0 %v171
    %260 = vmatprep.subr.mxu0 0.0
    %261 = vmatpush1.msra.mxu0 0.0
    %262 = vmatprep.subr.mxu0 0.0
    %263 = vmatpush1.msra.mxu0 0.0
    %264 = vmatprep.subr.mxu0 0.0
    %265 = vmatpush1.msra.mxu0 0.0
    %266 = vmatprep.subr.mxu0 0.0
    %267 = vmatpush1.msra.mxu0 0.0
    %268 = vmatprep.subr.mxu0 0.0
    %269 = vmatpush1.msra.mxu0 0.0
    %270 = vmatprep.subr.mxu0 0.0
    %271 = vmatpush1.msra.mxu0 0.0
    %272 = vmatprep.subr.mxu0 0.0
    %273 = vmatpush1.msra.mxu0 0.0
    %274 = vmatprep.subr.mxu0 0.0
    %275 = vmatpush1.msra.mxu0 0.0
    %276 = vmatprep.subr.mxu0 0.0
    %277 = vmatpush1.msra.mxu0 0.0
    %278 = vmatprep.subr.mxu0 0.0
    %279 = vmatpush1.msra.mxu0 0.0
    %280 = vmatprep.subr.mxu0 0.0
    %281 = vmatpush1.msra.mxu0 0.0
    %282 = vmatprep.subr.mxu0 0.0
    %283 = vmatpush1.msra.mxu0 0.0
    %284 = vmatprep.subr.mxu0 0.0
    %285 = vmatpush1.msra.mxu0 0.0
    %286 = vmatprep.subr.mxu0 0.0
    %287 = vmatpush1.msra.mxu0 0.0
    %288 = vmatprep.subr.mxu0 0.0
    %289 = vmatpush1.msra.mxu0 0.0
    %290 = vmatprep.subr.mxu0 0.0
    %291 = vmatpush1.msra.mxu0 0.0
    %292 = vmatprep.subr.mxu0 0.0
    %293 = vmatpush1.msra.mxu0 0.0
    %294 = vmatprep.subr.mxu0 0.0
    %295 = vmatpush1.msra.mxu0 0.0
    %296 = vmatprep.subr.mxu0 0.0
    %297 = vmatpush1.msra.mxu0 0.0
    %298 = vmatprep.subr.mxu0 0.0
    %299 = vmatpush1.msra.mxu0 0.0
    %300 = vmatprep.subr.mxu0 0.0
    %301 = vmatpush1.msra.mxu0 0.0
    %302 = vmatprep.subr.mxu0 0.0
    %303 = vmatpush1.msra.mxu0 0.0
    %304 = vmatprep.subr.mxu0 0.0
    %305 = vmatpush1.msra.mxu0 0.0
    %306 = vmatprep.subr.mxu0 0.0
    %307 = vmatpush1.msra.mxu0 0.0
    %308 = vmatprep.subr.mxu0 0.0
    %309 = vmatpush1.msra.mxu0 0.0
    %310 = vmatprep.subr.mxu0 0.0
    %311 = vmatpush1.msra.mxu0 0.0
    %312 = vmatprep.subr.mxu0 0.0
    %313 = vmatpush1.msra.mxu0 0.0
    %314 = vmatprep.subr.mxu0 0.0
    %315 = vmatpush1.msra.mxu0 0.0
    %316 = vmatprep.mubr.f32.mxu0 0.0
    %317 = vmatmul.mubr.f32.gmra.mrb[0].mxu0 %v250
    %v318 = vpop.f32.mrb[0].mxu0
    %v319 = vadd.f32 %v246, %v318
    %v320 = vpop.f32.mrb[0].mxu0
    %321 = vdwg.mxu0
    %v322 = vld [vmem:[%s6] sm:$0x1]
    %v324 = vlaneseq
    %v325 = vshrl.u32 %v324, 7
    %v326 = vsub.s32 0, %v325
    %v327 = vrot.slane %v322, %v326
    %v329 = vadd.f32 %v319, %v327
    %v330 = vlaneseq
    %v331 = vand.u32 %v330, 127
    %vm332 = vcmp.lt.s32.totalorder %v331, 32
    %v333 = vmul.f32 %v329, 1.442695
    %v334 = vpow.pop %v333
    %v335 = vsel %vm332, %v329, %v334
    %vm336 = vcmask 523264
    %337 = vst.msk [vmem:[%s8] sm:$0xff] %vm336, %v335
    // Predicated region
    $region46: #{_encoder_forward.1} parent=1 // pred_check
      _
    $region47: #{_encoder_forward.1} parent=1 // pred_check_branch
      %339 = sbr.rel (0) target = $region49
    $region48: #{_encoder_forward.1} parent=1 // pred_region
      %s341 = ssub.s32 128, 128
      %342 = vsyncadd [#allocation4], %s341
      %s344 = sshll.u32 [#allocation10], 4
      %s345 = int_to_ptr.vmem [resolvable:$true] %s344
      %347 = dma.vmem_to_hbm [thread:$0]  %s345, 128, %s7, [#allocation4]
    $region49: #{_encoder_forward.1} parent=1 // pred_fallthru
      _
    // Predicated region
    $region50: #{_encoder_forward.1} parent=1 // pred_check
      _
    $region51: #{_encoder_forward.1} parent=1 // pred_check_branch
      %349 = sbr.rel (0) target = $region53
    $region52: #{_encoder_forward.1} parent=1 // pred_region
      _
    $region53: #{_encoder_forward.1} parent=1 // pred_fallthru
      _
    // Predicated region
    $region54: #{_encoder_forward.1} parent=1 // pred_check
      _
    $region55: #{_encoder_forward.1} parent=1 // pred_check_branch
      %351 = sbr.rel (0) target = $region57
    $region56: #{_encoder_forward.1} parent=1 // pred_region
      %352 = dma.done [#allocation4], 128
    $region57: #{_encoder_forward.1} parent=1 // pred_fallthru
      _
    // Predicated region
    $region58: #{_encoder_forward.1} parent=1 // pred_check
      _
    $region59: #{_encoder_forward.1} parent=1 // pred_check_branch
      %354 = sbr.rel (0) target = $region61
    $region60: #{_encoder_forward.1} parent=1 // pred_region
      _
    $region61: #{_encoder_forward.1} parent=1 // pred_fallthru
      _
    %355 = vsyncpa [#allocation3], 1
    %356 = vsyncpa [#allocation6], 1
    %357 = vsyncpa [#allocation9], 1
    %358 = vsyncpa [#allocation4], 1

</llo_original>
